<compile_context>
chip_gen: v7x
topology: tpu7x:2x2x1
jax: 0.10.0
libtpu: 0.0.40
codegen_flags: <defaults>
</compile_context>

<pallas_src>
import jax
import jax.numpy as jnp
from jax.experimental import pallas as pl
from jax.experimental.pallas import tpu as pltpu


def _probe_kernel(x_ref, w1_ref, b1_ref, w2_ref, b2_ref, w3_ref, b3_ref, o_ref):
    """Fused 3-layer MLP on one batch tile: (matmul+bias+relu) x2 -> matmul+bias.

    x arrives in its original dtype (f32) and is cast to bf16 in-registers (VPU,
    hidden under the DMA). Matmul operands bf16, accumulation / bias / ReLU f32.
    The last layer is computed into a 128-lane-wide slab and only the first
    `output_dim` columns are stored.
    """
    x = x_ref[...].astype(jnp.bfloat16)                                 # (tb, D)
    h1 = jnp.dot(x, w1_ref[...], preferred_element_type=jnp.float32)
    h1 = jnp.maximum(h1 + b1_ref[...], 0.0)                             # (tb, H)  f32
    h2 = jnp.dot(h1.astype(jnp.bfloat16), w2_ref[...],
                 preferred_element_type=jnp.float32)
    h2 = jnp.maximum(h2 + b2_ref[...], 0.0)                             # (tb, H)  f32
    y = jnp.dot(h2.astype(jnp.bfloat16), w3_ref[...],
                preferred_element_type=jnp.float32) + b3_ref[...]       # (tb, Op) f32
    o_dim = o_ref.shape[-1]
    o_ref[...] = y[:, :o_dim].astype(o_ref.dtype)                       # unpadded store


def _pick_tile_b(B, max_tile_b):
    """Adaptive batch tile.

    - B <= 128: one full-batch tile (block dim == array dim, no alignment
      constraint, zero padding waste; step overhead would dominate a split).
    - B  > 128: multiple of 16 (bf16 sublane packing), at least 2 grid steps so
      ("parallel",) shards across both v7x TensorCores, floor 64 rows so the
      ~0.35 us/step overhead stays amortized, capped at max_tile_b.
    The last grid step may be partial; Pallas masks the out-of-range rows.
    """
    if B <= 128:
        return B
    half = -(-B // 2)                                   # ceil(B/2) -> >=2 steps
    tile = min(max_tile_b, max(64, ((half + 15) // 16) * 16))
    return tile


def uncertainty_probe_forward(x_nchw, params, *, max_tile_b=256,
                              single_buffer_weights=None):
    """Run the UncertaintyProbe forward pass with a single batch-tiled Pallas kernel.

    Args:
      x_nchw: (B, C, H, W) input (NCHW, matching PyTorch); flattened as x.view(B, -1).
      params: dict of posterior-mean weights, pre-transposed to (in, out):
        w1 (D, Hd), b1 (1, Hd), w2 (Hd, Hd), b2 (1, Hd), w3 (Hd, O), b3 (1, O)
      max_tile_b: cap on the batch tile. 256 is a good default everywhere; on
        single-TC chips (v5e/v6e) with plenty of VMEM it can be raised to 512 to
        further amortize per-step overhead.
      single_buffer_weights: force pl.Buffered(1) on the grid-invariant weight
        specs. Default (None) auto-enables it only when the resident weights are
        large enough to matter (> 4 MiB), which is when it buys VMEM headroom
        (v7x has only 64 MiB physical / 32 MiB scoped default).
    Returns:
      (B, O) float32 output.
    """
    B = x_nchw.shape[0]
    x_flat = x_nchw.reshape(B, -1)                      # == torch x.view(B, -1); no copy
    D = x_flat.shape[1]
    Hd = params["w1"].shape[1]
    O = params["w3"].shape[1]

    # Lane-dense slab width for the in-register layer-3 compute (store stays (B, O)).
    O_pad = 128 * pl.cdiv(O, 128)

    tile_b = _pick_tile_b(B, max_tile_b)
    grid = (pl.cdiv(B, tile_b),)

    # Small operand prep (weights only; x is passed through untouched).
    w1 = params["w1"].astype(jnp.bfloat16)
    w2 = params["w2"].astype(jnp.bfloat16)
    w3 = jnp.pad(params["w3"], ((0, 0), (0, O_pad - O))).astype(jnp.bfloat16)
    b1 = params["b1"].astype(jnp.float32)
    b2 = params["b2"].astype(jnp.float32)
    b3 = jnp.pad(params["b3"].astype(jnp.float32), ((0, 0), (0, O_pad - O)))

    resident = lambda i: (0, 0)   # weights/biases: same block every step -> VMEM-resident

    weight_bytes = ((w1.size + w2.size + w3.size) * 2
                    + (b1.size + b2.size + b3.size) * 4)
    if single_buffer_weights is None:
        single_buffer_weights = weight_bytes > (4 << 20)
    # Grid-invariant operands don't need a second pipeline buffer; Buffered(1)
    # halves their resident VMEM at zero compute cost (only engaged when it matters).
    w_mode = dict(pipeline_mode=pl.Buffered(1)) if single_buffer_weights else {}

    flops = 2 * B * (D * Hd + Hd * Hd + Hd * O_pad)
    bytes_accessed = (x_flat.size * x_flat.dtype.itemsize   # x streamed once, native dtype
                      + weight_bytes                         # resident weights/biases
                      + B * O * 4)                           # unpadded f32 output

    out = pl.pallas_call(
        _probe_kernel,
        out_shape=jax.ShapeDtypeStruct((B, O), jnp.float32),
        grid=grid,
        in_specs=[
            pl.BlockSpec((tile_b, D), lambda i: (i, 0)),             # x: streamed per tile
            pl.BlockSpec((D, Hd), resident, **w_mode),               # w1
            pl.BlockSpec((1, Hd), resident, **w_mode),               # b1
            pl.BlockSpec((Hd, Hd), resident, **w_mode),              # w2
            pl.BlockSpec((1, Hd), resident, **w_mode),               # b2
            pl.BlockSpec((Hd, O_pad), resident, **w_mode),           # w3 (128-lane slab)
            pl.BlockSpec((1, O_pad), resident, **w_mode),            # b3 (128-lane slab)
        ],
        out_specs=pl.BlockSpec((tile_b, O), lambda i: (i, 0)),       # unpadded writeback
        compiler_params=pltpu.CompilerParams(
            dimension_semantics=("parallel",),                       # megacore sharding on v7x
        ),
        cost_estimate=pl.CostEstimate(
            flops=flops, transcendentals=0, bytes_accessed=bytes_accessed),
    )(x_flat, w1, b1, w2, b2, w3, b3)

    return out


def init_probe_params(key, input_dim, hidden_dim=128, output_dim=1):
    """Deterministic init mirroring BayesianLinear: weight_mu = randn(out,in)*0.1,
    bias_mu = randn(out)*0.1. Only the mean (mu) parameters are kept, pre-transposed
    to (in, out) for the kernel's row-major matmuls."""
    ks = jax.random.split(key, 6)

    def linear(kw, kb, in_f, out_f):
        w_mu = jax.random.normal(kw, (out_f, in_f), jnp.float32) * 0.1   # torch layout
        b_mu = jax.random.normal(kb, (out_f,), jnp.float32) * 0.1
        return w_mu.T, b_mu.reshape(1, out_f)                            # kernel layout

    w1, b1 = linear(ks[0], ks[1], input_dim, hidden_dim)
    w2, b2 = linear(ks[2], ks[3], hidden_dim, hidden_dim)
    w3, b3 = linear(ks[4], ks[5], hidden_dim, output_dim)
    return {"w1": w1, "b1": b1, "w2": w2, "b2": b2, "w3": w3, "b3": b3}


def _reference_forward(x_nchw, params):
    """Pure-JAX reference with the same numerics as the kernel:
    bf16 matmul operands, f32 accumulation, f32 bias/ReLU."""
    B = x_nchw.shape[0]
    x = x_nchw.reshape(B, -1).astype(jnp.bfloat16)
    w1 = params["w1"].astype(jnp.bfloat16)
    w2 = params["w2"].astype(jnp.bfloat16)
    w3 = params["w3"].astype(jnp.bfloat16)
    h1 = jnp.maximum(
        jnp.dot(x, w1, preferred_element_type=jnp.float32) + params["b1"], 0.0)
    h2 = jnp.maximum(
        jnp.dot(h1.astype(jnp.bfloat16), w2, preferred_element_type=jnp.float32)
        + params["b2"], 0.0)
    return (jnp.dot(h2.astype(jnp.bfloat16), w3, preferred_element_type=jnp.float32)
            + params["b3"])


if __name__ == "__main__":
    key = jax.random.PRNGKey(0)
    k_x, k_p = jax.random.split(key)

    # Small shapes consistent with the module: NCHW feature map, flattened inside.
    B, C, H, W = 2, 4, 16, 16
    input_dim = C * H * W          # 1024
    hidden_dim = 128
    output_dim = 1

    x = jax.random.normal(k_x, (B, C, H, W), jnp.float32)
    params = init_probe_params(k_p, input_dim, hidden_dim, output_dim)

    out = uncertainty_probe_forward(x, params)
    out = jax.block_until_ready(out)

    ref = _reference_forward(x, params)
    assert out.shape == (B, output_dim), out.shape
    assert jnp.allclose(out, ref, atol=1e-3, rtol=1e-3), (
        f"mismatch: max abs err {jnp.max(jnp.abs(out - ref))}"
    )

    print("KERNEL_OK")
</pallas_src>

<mosaic_0001>
module attributes {stable_mosaic.version = 11 : i64} {
  func.func @_probe_kernel(%arg0: i32, %arg1: memref<2x1024xf32, #tpu.memory_space<vmem>>, %arg2: memref<1024x128xbf16, #tpu.memory_space<vmem>>, %arg3: memref<1x128xf32, #tpu.memory_space<vmem>>, %arg4: memref<128x128xbf16, #tpu.memory_space<vmem>>, %arg5: memref<1x128xf32, #tpu.memory_space<vmem>>, %arg6: memref<128x128xbf16, #tpu.memory_space<vmem>>, %arg7: memref<1x128xf32, #tpu.memory_space<vmem>>, %arg8: memref<2x1xf32, #tpu.memory_space<vmem>>) attributes {dimension_semantics = [#tpu.dimension_semantics<parallel>], iteration_bounds = array<i64: 1>, scalar_prefetch = 0 : i64, scratch_operands = 0 : i64, tpu.core_type = #tpu.core_type<tc>, window_params = [{transform_indices = @transform_0, window_bounds = array<i64: 2, 1024>}, {pipeline_mode = #tpu.pipeline_mode<synchronous>, transform_indices = @transform_1, window_bounds = array<i64: 1024, 128>}, {pipeline_mode = #tpu.pipeline_mode<synchronous>, transform_indices = @transform_2, window_bounds = array<i64: 1, 128>}, {pipeline_mode = #tpu.pipeline_mode<synchronous>, transform_indices = @transform_3, window_bounds = array<i64: 128, 128>}, {pipeline_mode = #tpu.pipeline_mode<synchronous>, transform_indices = @transform_4, window_bounds = array<i64: 1, 128>}, {pipeline_mode = #tpu.pipeline_mode<synchronous>, transform_indices = @transform_5, window_bounds = array<i64: 128, 128>}, {pipeline_mode = #tpu.pipeline_mode<synchronous>, transform_indices = @transform_6, window_bounds = array<i64: 1, 128>}, {transform_indices = @transform_7, window_bounds = array<i64: 2, 1>}]} {
    %c0 = arith.constant 0 : index
    %c0_0 = arith.constant 0 : index
    %0 = vector.load %arg1[%c0, %c0_0] : memref<2x1024xf32, #tpu.memory_space<vmem>>, vector<2x1024xf32>
    %1 = arith.truncf %0 : vector<2x1024xf32> to vector<2x1024xbf16>
    %c0_1 = arith.constant 0 : index
    %c0_2 = arith.constant 0 : index
    %2 = vector.load %arg2[%c0_1, %c0_2] : memref<1024x128xbf16, #tpu.memory_space<vmem>>, vector<1024x128xbf16>
    %cst = arith.constant dense<0.000000e+00> : vector<2x128xf32>
    %3 = tpu.matmul %1, %2, %cst {dimension_numbers = #tpu.dot_dimension_numbers<[1], [0], [0], [1], [0, 0, 1, 1], [], []>} : vector<2x1024xbf16>, vector<1024x128xbf16>, vector<2x128xf32> -> vector<2x128xf32>
    %c0_3 = arith.constant 0 : index
    %c0_4 = arith.constant 0 : index
    %4 = vector.load %arg3[%c0_3, %c0_4] : memref<1x128xf32, #tpu.memory_space<vmem>>, vector<1x128xf32>
    %5 = vector.broadcast %4 : vector<1x128xf32> to vector<2x128xf32>
    %6 = arith.addf %3, %5 : vector<2x128xf32>
    %cst_5 = arith.constant 0.000000e+00 : f32
    %7 = vector.broadcast %cst_5 : f32 to vector<2x128xf32>
    %8 = arith.maximumf %6, %7 : vector<2x128xf32>
    %9 = arith.truncf %8 : vector<2x128xf32> to vector<2x128xbf16>
    %c0_6 = arith.constant 0 : index
    %c0_7 = arith.constant 0 : index
    %10 = vector.load %arg4[%c0_6, %c0_7] : memref<128x128xbf16, #tpu.memory_space<vmem>>, vector<128x128xbf16>
    %cst_8 = arith.constant dense<0.000000e+00> : vector<2x128xf32>
    %11 = tpu.matmul %9, %10, %cst_8 {dimension_numbers = #tpu.dot_dimension_numbers<[1], [0], [0], [1], [0, 0, 1, 1], [], []>} : vector<2x128xbf16>, vector<128x128xbf16>, vector<2x128xf32> -> vector<2x128xf32>
    %c0_9 = arith.constant 0 : index
    %c0_10 = arith.constant 0 : index
    %12 = vector.load %arg5[%c0_9, %c0_10] : memref<1x128xf32, #tpu.memory_space<vmem>>, vector<1x128xf32>
    %13 = vector.broadcast %12 : vector<1x128xf32> to vector<2x128xf32>
    %14 = arith.addf %11, %13 : vector<2x128xf32>
    %cst_11 = arith.constant 0.000000e+00 : f32
    %15 = vector.broadcast %cst_11 : f32 to vector<2x128xf32>
    %16 = arith.maximumf %14, %15 : vector<2x128xf32>
    %17 = arith.truncf %16 : vector<2x128xf32> to vector<2x128xbf16>
    %c0_12 = arith.constant 0 : index
    %c0_13 = arith.constant 0 : index
    %18 = vector.load %arg6[%c0_12, %c0_13] : memref<128x128xbf16, #tpu.memory_space<vmem>>, vector<128x128xbf16>
    %cst_14 = arith.constant dense<0.000000e+00> : vector<2x128xf32>
    %19 = tpu.matmul %17, %18, %cst_14 {dimension_numbers = #tpu.dot_dimension_numbers<[1], [0], [0], [1], [0, 0, 1, 1], [], []>} : vector<2x128xbf16>, vector<128x128xbf16>, vector<2x128xf32> -> vector<2x128xf32>
    %c0_15 = arith.constant 0 : index
    %c0_16 = arith.constant 0 : index
    %20 = vector.load %arg7[%c0_15, %c0_16] : memref<1x128xf32, #tpu.memory_space<vmem>>, vector<1x128xf32>
    %21 = vector.broadcast %20 : vector<1x128xf32> to vector<2x128xf32>
    %22 = arith.addf %19, %21 : vector<2x128xf32>
    %23 = vector.extract_strided_slice %22 {offsets = [0, 0], sizes = [2, 1], strides = [1, 1]} : vector<2x128xf32> to vector<2x1xf32>
    %c0_17 = arith.constant 0 : index
    %c0_18 = arith.constant 0 : index
    %24 = vector.load %arg8[%c0_17, %c0_18] : memref<2x1xf32, #tpu.memory_space<vmem>>, vector<2x1xf32>
    tpu.vector_store %arg8[%c0_17, %c0_18], %23 {strides = array<i32>} : memref<2x1xf32, #tpu.memory_space<vmem>>, vector<2x1xf32>,
    return
  }
  func.func @transform_0(%arg0: i32) -> (i32, i32) {
    %c0_i32 = arith.constant 0 : i32
    %c0_i32_0 = arith.constant 0 : i32
    return %arg0, %c0_i32 : i32, i32
  }
  func.func @transform_1(%arg0: i32) -> (i32, i32) {
    %c0_i32 = arith.constant 0 : i32
    %c0_i32_0 = arith.constant 0 : i32
    %c0_i32_1 = arith.constant 0 : i32
    return %c0_i32, %c0_i32_0 : i32, i32
  }
  func.func @transform_2(%arg0: i32) -> (i32, i32) {
    %c0_i32 = arith.constant 0 : i32
    %c0_i32_0 = arith.constant 0 : i32
    %c0_i32_1 = arith.constant 0 : i32
    return %c0_i32, %c0_i32_0 : i32, i32
  }
  func.func @transform_3(%arg0: i32) -> (i32, i32) {
    %c0_i32 = arith.constant 0 : i32
    %c0_i32_0 = arith.constant 0 : i32
    %c0_i32_1 = arith.constant 0 : i32
    return %c0_i32, %c0_i32_0 : i32, i32
  }
  func.func @transform_4(%arg0: i32) -> (i32, i32) {
    %c0_i32 = arith.constant 0 : i32
    %c0_i32_0 = arith.constant 0 : i32
    %c0_i32_1 = arith.constant 0 : i32
    return %c0_i32, %c0_i32_0 : i32, i32
  }
  func.func @transform_5(%arg0: i32) -> (i32, i32) {
    %c0_i32 = arith.constant 0 : i32
    %c0_i32_0 = arith.constant 0 : i32
    %c0_i32_1 = arith.constant 0 : i32
    return %c0_i32, %c0_i32_0 : i32, i32
  }
  func.func @transform_6(%arg0: i32) -> (i32, i32) {
    %c0_i32 = arith.constant 0 : i32
    %c0_i32_0 = arith.constant 0 : i32
    %c0_i32_1 = arith.constant 0 : i32
    return %c0_i32, %c0_i32_0 : i32, i32
  }
  func.func @transform_7(%arg0: i32) -> (i32, i32) {
    %c0_i32 = arith.constant 0 : i32
    %c0_i32_0 = arith.constant 0 : i32
    return %arg0, %c0_i32 : i32, i32
  }
}

</mosaic_0001>

<llo_original>
// kernel: tpu_custom_call.1
$region0: #{tpu_custom_call.1}
  #allocation0 [shape = 'u32[]', space=smem, size = 0x4, offset = 0x4, fixed_abs, tag = 'smem constant byte address 0x4 - core index']
  #allocation1 [shape = 'u32[144,128]{1,0:T(1,128)}', space=vmem, size = 0x12000, scoped, tag = 'internal scratch']
  %s0 = inlined_call_operand.hbm [shape: f32[2,1024], index: 0, kind: input, shape index: {}]
  %s1 = inlined_call_operand.hbm [shape: bf16[1024,128], index: 1, kind: input, shape index: {}]
  %s2 = inlined_call_operand.vmem [shape: f32[1,128], index: 2, kind: input, shape index: {}]
  %s3 = inlined_call_operand.hbm [shape: bf16[128,128], index: 3, kind: input, shape index: {}]
  %s4 = inlined_call_operand.vmem [shape: f32[1,128], index: 4, kind: input, shape index: {}]
  %s5 = inlined_call_operand.hbm [shape: bf16[128,128], index: 5, kind: input, shape index: {}]
  %s6 = inlined_call_operand.vmem [shape: f32[1,128], index: 6, kind: input, shape index: {}]
  %s7 = inlined_call_operand.vmem [shape: f32[2,1], index: 7, kind: output, shape index: {}]
  %s8 = sld [smem:[#allocation0]]
  $region54: #{tpu_custom_call.1} parent=0
    _
  %s10 = ssub.s32 1, %s8
  %s11 = scalar_select 0, %s10, %s8
  $region1: #{tpu_custom_call.1} parent=0
    #allocation2 [shape = 'u8[8192]{0}', space=vmem, size = 0x2000, scoped, tag = 'input window, operand 0, single buffered']
    #allocation3 [shape = 's32[1]{0}', space=sflag, size = 0x4, scoped, tag = 'scoped memory for tpu_custom_call.1']
    #allocation4 [shape = 'u8[262144]{0}', space=vmem, size = 0x40000, scoped, tag = 'input window, operand 1, single buffered']
    #allocation5 [shape = 's32[1]{0}', space=sflag, size = 0x4, scoped, tag = 'scoped memory for tpu_custom_call.1']
    #allocation6 [shape = 'u8[32768]{0}', space=vmem, size = 0x8000, scoped, tag = 'input window, operand 3, single buffered']
    #allocation7 [shape = 'u8[32768]{0}', space=vmem, size = 0x8000, scoped, tag = 'input window, operand 5, single buffered']
    #allocation8 [shape = 's32[1]{0}', space=sflag, size = 0x4, scoped, tag = 'scoped memory for tpu_custom_call.1']
    %12 = vsyncpa [#allocation3], 0
    %13 = vsyncpa [#allocation5], 0
    %14 = vsyncpa [#allocation8], 0
    // Predicated region
    $region2: #{tpu_custom_call.1} parent=1 // pred_check
      _
    $region3: #{tpu_custom_call.1} parent=1 // pred_check_branch
      %16 = sbr.rel (0) target = $region5
    $region4: #{tpu_custom_call.1} parent=1 // pred_region
      %s18 = ssub.s32 256, 256
      %19 = vsyncadd [#allocation3], %s18
      %s21 = sshll.u32 [#allocation2], 4
      %s22 = int_to_ptr.vmem [resolvable:$true] %s21
      %24 = dma.hbm_to_vmem [thread:$0]  %s0, 256, %s22, [#allocation3]
    $region5: #{tpu_custom_call.1} parent=1 // pred_fallthru
      _
    // Predicated region
    $region6: #{tpu_custom_call.1} parent=1 // pred_check
      _
    $region7: #{tpu_custom_call.1} parent=1 // pred_check_branch
      %26 = sbr.rel (0) target = $region9
    $region8: #{tpu_custom_call.1} parent=1 // pred_region
      %s28 = ssub.s32 8192, 8192
      %29 = vsyncadd [#allocation5], %s28
      %s30 = sshll.u32 [#allocation4], 4
      %s31 = int_to_ptr.vmem [resolvable:$true] %s30
      %36 = dma.hbm_to_vmem [thread:$0]  %s1, 8192, %s31, [#allocation5], 64, 64, 4
    $region9: #{tpu_custom_call.1} parent=1 // pred_fallthru
      _
    // Predicated region
    $region10: #{tpu_custom_call.1} parent=1 // pred_check
      _
    $region11: #{tpu_custom_call.1} parent=1 // pred_check_branch
      %38 = sbr.rel (0) target = $region13
    $region12: #{tpu_custom_call.1} parent=1 // pred_region
      _
    $region13: #{tpu_custom_call.1} parent=1 // pred_fallthru
      _
    // Predicated region
    $region14: #{tpu_custom_call.1} parent=1 // pred_check
      _
    $region15: #{tpu_custom_call.1} parent=1 // pred_check_branch
      %40 = sbr.rel (0) target = $region17
    $region16: #{tpu_custom_call.1} parent=1 // pred_region
      %s42 = ssub.s32 1024, 1024
      %43 = vsyncadd [#allocation5], %s42
      %s44 = sshll.u32 [#allocation6], 4
      %s45 = int_to_ptr.vmem [resolvable:$true] %s44
      %50 = dma.hbm_to_vmem [thread:$0]  %s3, 1024, %s45, [#allocation5], 64, 64, 4
    $region17: #{tpu_custom_call.1} parent=1 // pred_fallthru
      _
    // Predicated region
    $region18: #{tpu_custom_call.1} parent=1 // pred_check
      _
    $region19: #{tpu_custom_call.1} parent=1 // pred_check_branch
      %52 = sbr.rel (0) target = $region21
    $region20: #{tpu_custom_call.1} parent=1 // pred_region
      _
    $region21: #{tpu_custom_call.1} parent=1 // pred_fallthru
      _
    // Predicated region
    $region22: #{tpu_custom_call.1} parent=1 // pred_check
      _
    $region23: #{tpu_custom_call.1} parent=1 // pred_check_branch
      %54 = sbr.rel (0) target = $region25
    $region24: #{tpu_custom_call.1} parent=1 // pred_region
      %s56 = ssub.s32 1024, 1024
      %57 = vsyncadd [#allocation8], %s56
      %s58 = sshll.u32 [#allocation7], 4
      %s59 = int_to_ptr.vmem [resolvable:$true] %s58
      %64 = dma.hbm_to_vmem [thread:$0]  %s5, 1024, %s59, [#allocation8], 64, 64, 4
    $region25: #{tpu_custom_call.1} parent=1 // pred_fallthru
      _
    // Predicated region
    $region26: #{tpu_custom_call.1} parent=1 // pred_check
      _
    $region27: #{tpu_custom_call.1} parent=1 // pred_check_branch
      %66 = sbr.rel (0) target = $region29
    $region28: #{tpu_custom_call.1} parent=1 // pred_region
      _
    $region29: #{tpu_custom_call.1} parent=1 // pred_fallthru
      _
    // Predicated region
    $region30: #{tpu_custom_call.1} parent=1 // pred_check
      _
    $region31: #{tpu_custom_call.1} parent=1 // pred_check_branch
      %68 = sbr.rel (0) target = $region33
    $region32: #{tpu_custom_call.1} parent=1 // pred_region
      %69 = dma.done [#allocation3], 256
    $region33: #{tpu_custom_call.1} parent=1 // pred_fallthru
      _
    // Predicated region
    $region34: #{tpu_custom_call.1} parent=1 // pred_check
      _
    $region35: #{tpu_custom_call.1} parent=1 // pred_check_branch
      %71 = sbr.rel (0) target = $region37
    $region36: #{tpu_custom_call.1} parent=1 // pred_region
      %72 = dma.done [#allocation5], 8192
    $region37: #{tpu_custom_call.1} parent=1 // pred_fallthru
      _
    // Predicated region
    $region38: #{tpu_custom_call.1} parent=1 // pred_check
      _
    $region39: #{tpu_custom_call.1} parent=1 // pred_check_branch
      %74 = sbr.rel (0) target = $region41
    $region40: #{tpu_custom_call.1} parent=1 // pred_region
      %75 = dma.done [#allocation5], 1024
    $region41: #{tpu_custom_call.1} parent=1 // pred_fallthru
      _
    // Predicated region
    $region42: #{tpu_custom_call.1} parent=1 // pred_check
      _
    $region43: #{tpu_custom_call.1} parent=1 // pred_check_branch
      %77 = sbr.rel (0) target = $region45
    $region44: #{tpu_custom_call.1} parent=1 // pred_region
      %78 = dma.done [#allocation8], 1024
    $region45: #{tpu_custom_call.1} parent=1 // pred_fallthru
      _
    %v80 = vld [vmem:[#allocation2] sm:$0xff]
    %v81 = vld [vmem:[#allocation2 + $0x8] sm:$0xff]
    %v84 = vcombine.high %v80, %v80
    %v86 = vunpack.c.l.s4 1983009808
    %v87 = vunpack.c.0.s8 %v86
    %v88 = vlaneseq
    %v89 = vshrl.u32 %v88, 7
    %v90 = vsub.s32 %v87, %v89
    %v91 = vrot.slane %v80, %v90
    %v93 = vunpack.c.l.s4 1983009808
    %v94 = vunpack.c.0.s8 %v93
    %v95 = vlaneseq
    %v96 = vshrl.u32 %v95, 7
    %v97 = vsub.s32 %v94, %v96
    %v98 = vrot.slane %v84, %v97
    %v99 = vcombine.high %v91, %v91
    %v100 = vcombine.high %v98, %v98
    %v101 = vcombine.high %v81, %v81
    %v103 = vunpack.c.l.s4 1983009808
    %v104 = vunpack.c.0.s8 %v103
    %v105 = vlaneseq
    %v106 = vshrl.u32 %v105, 7
    %v107 = vsub.s32 %v104, %v106
    %v108 = vrot.slane %v81, %v107
    %v110 = vunpack.c.l.s4 1983009808
    %v111 = vunpack.c.0.s8 %v110
    %v112 = vlaneseq
    %v113 = vshrl.u32 %v112, 7
    %v114 = vsub.s32 %v111, %v113
    %v115 = vrot.slane %v101, %v114
    %v116 = vcombine.high %v108, %v108
    %v117 = vcombine.high %v115, %v115
    %v126 = vpack.c.bf16 %v91, %v91
    %v127 = vpack.c.bf16 %v99, %v99
    %v128 = vpack.c.bf16 %v98, %v98
    %v129 = vpack.c.bf16 %v100, %v100
    %v130 = vpack.c.bf16 %v108, %v108
    %v131 = vpack.c.bf16 %v116, %v116
    %v132 = vpack.c.bf16 %v115, %v115
    %v133 = vpack.c.bf16 %v117, %v117
    %v134 = vld [vmem:[#allocation4] sm:$0xf]
    %v135 = vld [vmem:[#allocation4 + $0x4] sm:$0xf]
    %v136 = vld [vmem:[#allocation4 + $0x8] sm:$0xf]
    %v137 = vld [vmem:[#allocation4 + $0xc] sm:$0xf]
    %v138 = vld [vmem:[#allocation4 + $0x10] sm:$0xf]
    %v139 = vld [vmem:[#allocation4 + $0x14] sm:$0xf]
    %v140 = vld [vmem:[#allocation4 + $0x18] sm:$0xf]
    %v141 = vld [vmem:[#allocation4 + $0x1c] sm:$0xf]
    %v142 = vld [vmem:[#allocation4 + $0x20] sm:$0xf]
    %v143 = vld [vmem:[#allocation4 + $0x24] sm:$0xf]
    %v144 = vld [vmem:[#allocation4 + $0x28] sm:$0xf]
    %v145 = vld [vmem:[#allocation4 + $0x2c] sm:$0xf]
    %v146 = vld [vmem:[#allocation4 + $0x30] sm:$0xf]
    %v147 = vld [vmem:[#allocation4 + $0x34] sm:$0xf]
    %v148 = vld [vmem:[#allocation4 + $0x38] sm:$0xf]
    %v149 = vld [vmem:[#allocation4 + $0x3c] sm:$0xf]
    %v150 = vld [vmem:[#allocation4 + $0x40] sm:$0xf]
    %v151 = vld [vmem:[#allocation4 + $0x44] sm:$0xf]
    %v152 = vld [vmem:[#allocation4 + $0x48] sm:$0xf]
    %v153 = vld [vmem:[#allocation4 + $0x4c] sm:$0xf]
    %v154 = vld [vmem:[#allocation4 + $0x50] sm:$0xf]
    %v155 = vld [vmem:[#allocation4 + $0x54] sm:$0xf]
    %v156 = vld [vmem:[#allocation4 + $0x58] sm:$0xf]
    %v157 = vld [vmem:[#allocation4 + $0x5c] sm:$0xf]
    %v158 = vld [vmem:[#allocation4 + $0x60] sm:$0xf]
    %v159 = vld [vmem:[#allocation4 + $0x64] sm:$0xf]
    %v160 = vld [vmem:[#allocation4 + $0x68] sm:$0xf]
    %v161 = vld [vmem:[#allocation4 + $0x6c] sm:$0xf]
    %v162 = vld [vmem:[#allocation4 + $0x70] sm:$0xf]
    %v163 = vld [vmem:[#allocation4 + $0x74] sm:$0xf]
    %v164 = vld [vmem:[#allocation4 + $0x78] sm:$0xf]
    %v165 = vld [vmem:[#allocation4 + $0x7c] sm:$0xf]
    %v166 = vld [vmem:[#allocation4 + $0x80] sm:$0xf]
    %v167 = vld [vmem:[#allocation4 + $0x84] sm:$0xf]
    %v168 = vld [vmem:[#allocation4 + $0x88] sm:$0xf]
    %v169 = vld [vmem:[#allocation4 + $0x8c] sm:$0xf]
    %v170 = vld [vmem:[#allocation4 + $0x90] sm:$0xf]
    %v171 = vld [vmem:[#allocation4 + $0x94] sm:$0xf]
    %v172 = vld [vmem:[#allocation4 + $0x98] sm:$0xf]
    %v173 = vld [vmem:[#allocation4 + $0x9c] sm:$0xf]
    %v174 = vld [vmem:[#allocation4 + $0xa0] sm:$0xf]
    %v175 = vld [vmem:[#allocation4 + $0xa4] sm:$0xf]
    %v176 = vld [vmem:[#allocation4 + $0xa8] sm:$0xf]
    %v177 = vld [vmem:[#allocation4 + $0xac] sm:$0xf]
    %v178 = vld [vmem:[#allocation4 + $0xb0] sm:$0xf]
    %v179 = vld [vmem:[#allocation4 + $0xb4] sm:$0xf]
    %v180 = vld [vmem:[#allocation4 + $0xb8] sm:$0xf]
    %v181 = vld [vmem:[#allocation4 + $0xbc] sm:$0xf]
    %v182 = vld [vmem:[#allocation4 + $0xc0] sm:$0xf]
    %v183 = vld [vmem:[#allocation4 + $0xc4] sm:$0xf]
    %v184 = vld [vmem:[#allocation4 + $0xc8] sm:$0xf]
    %v185 = vld [vmem:[#allocation4 + $0xcc] sm:$0xf]
    %v186 = vld [vmem:[#allocation4 + $0xd0] sm:$0xf]
    %v187 = vld [vmem:[#allocation4 + $0xd4] sm:$0xf]
    %v188 = vld [vmem:[#allocation4 + $0xd8] sm:$0xf]
    %v189 = vld [vmem:[#allocation4 + $0xdc] sm:$0xf]
    %v190 = vld [vmem:[#allocation4 + $0xe0] sm:$0xf]
    %v191 = vld [vmem:[#allocation4 + $0xe4] sm:$0xf]
    %v192 = vld [vmem:[#allocation4 + $0xe8] sm:$0xf]
    %v193 = vld [vmem:[#allocation4 + $0xec] sm:$0xf]
    %v194 = vld [vmem:[#allocation4 + $0xf0] sm:$0xf]
    %v195 = vld [vmem:[#allocation4 + $0xf4] sm:$0xf]
    %v196 = vld [vmem:[#allocation4 + $0xf8] sm:$0xf]
    %v197 = vld [vmem:[#allocation4 + $0xfc] sm:$0xf]
    %v198 = vld [vmem:[#allocation4 + $0x100] sm:$0xf]
    %v199 = vld [vmem:[#allocation4 + $0x104] sm:$0xf]
    %v200 = vld [vmem:[#allocation4 + $0x108] sm:$0xf]
    %v201 = vld [vmem:[#allocation4 + $0x10c] sm:$0xf]
    %v202 = vld [vmem:[#allocation4 + $0x110] sm:$0xf]
    %v203 = vld [vmem:[#allocation4 + $0x114] sm:$0xf]
    %v204 = vld [vmem:[#allocation4 + $0x118] sm:$0xf]
    %v205 = vld [vmem:[#allocation4 + $0x11c] sm:$0xf]
    %v206 = vld [vmem:[#allocation4 + $0x120] sm:$0xf]
    %v207 = vld [vmem:[#allocation4 + $0x124] sm:$0xf]
    %v208 = vld [vmem:[#allocation4 + $0x128] sm:$0xf]
    %v209 = vld [vmem:[#allocation4 + $0x12c] sm:$0xf]
    %v210 = vld [vmem:[#allocation4 + $0x130] sm:$0xf]
    %v211 = vld [vmem:[#allocation4 + $0x134] sm:$0xf]
    %v212 = vld [vmem:[#allocation4 + $0x138] sm:$0xf]
    %v213 = vld [vmem:[#allocation4 + $0x13c] sm:$0xf]
    %v214 = vld [vmem:[#allocation4 + $0x140] sm:$0xf]
    %v215 = vld [vmem:[#allocation4 + $0x144] sm:$0xf]
    %v216 = vld [vmem:[#allocation4 + $0x148] sm:$0xf]
    %v217 = vld [vmem:[#allocation4 + $0x14c] sm:$0xf]
    %v218 = vld [vmem:[#allocation4 + $0x150] sm:$0xf]
    %v219 = vld [vmem:[#allocation4 + $0x154] sm:$0xf]
    %v220 = vld [vmem:[#allocation4 + $0x158] sm:$0xf]
    %v221 = vld [vmem:[#allocation4 + $0x15c] sm:$0xf]
    %v222 = vld [vmem:[#allocation4 + $0x160] sm:$0xf]
    %v223 = vld [vmem:[#allocation4 + $0x164] sm:$0xf]
    %v224 = vld [vmem:[#allocation4 + $0x168] sm:$0xf]
    %v225 = vld [vmem:[#allocation4 + $0x16c] sm:$0xf]
    %v226 = vld [vmem:[#allocation4 + $0x170] sm:$0xf]
    %v227 = vld [vmem:[#allocation4 + $0x174] sm:$0xf]
    %v228 = vld [vmem:[#allocation4 + $0x178] sm:$0xf]
    %v229 = vld [vmem:[#allocation4 + $0x17c] sm:$0xf]
    %v230 = vld [vmem:[#allocation4 + $0x180] sm:$0xf]
    %v231 = vld [vmem:[#allocation4 + $0x184] sm:$0xf]
    %v232 = vld [vmem:[#allocation4 + $0x188] sm:$0xf]
    %v233 = vld [vmem:[#allocation4 + $0x18c] sm:$0xf]
    %v234 = vld [vmem:[#allocation4 + $0x190] sm:$0xf]
    %v235 = vld [vmem:[#allocation4 + $0x194] sm:$0xf]
    %v236 = vld [vmem:[#allocation4 + $0x198] sm:$0xf]
    %v237 = vld [vmem:[#allocation4 + $0x19c] sm:$0xf]
    %v238 = vld [vmem:[#allocation4 + $0x1a0] sm:$0xf]
    %v239 = vld [vmem:[#allocation4 + $0x1a4] sm:$0xf]
    %v240 = vld [vmem:[#allocation4 + $0x1a8] sm:$0xf]
    %v241 = vld [vmem:[#allocation4 + $0x1ac] sm:$0xf]
    %v242 = vld [vmem:[#allocation4 + $0x1b0] sm:$0xf]
    %v243 = vld [vmem:[#allocation4 + $0x1b4] sm:$0xf]
    %v244 = vld [vmem:[#allocation4 + $0x1b8] sm:$0xf]
    %v245 = vld [vmem:[#allocation4 + $0x1bc] sm:$0xf]
    %v246 = vld [vmem:[#allocation4 + $0x1c0] sm:$0xf]
    %v247 = vld [vmem:[#allocation4 + $0x1c4] sm:$0xf]
    %v248 = vld [vmem:[#allocation4 + $0x1c8] sm:$0xf]
    %v249 = vld [vmem:[#allocation4 + $0x1cc] sm:$0xf]
    %v250 = vld [vmem:[#allocation4 + $0x1d0] sm:$0xf]
    %v251 = vld [vmem:[#allocation4 + $0x1d4] sm:$0xf]
    %v252 = vld [vmem:[#allocation4 + $0x1d8] sm:$0xf]
    %v253 = vld [vmem:[#allocation4 + $0x1dc] sm:$0xf]
    %v254 = vld [vmem:[#allocation4 + $0x1e0] sm:$0xf]
    %v255 = vld [vmem:[#allocation4 + $0x1e4] sm:$0xf]
    %v256 = vld [vmem:[#allocation4 + $0x1e8] sm:$0xf]
    %v257 = vld [vmem:[#allocation4 + $0x1ec] sm:$0xf]
    %v258 = vld [vmem:[#allocation4 + $0x1f0] sm:$0xf]
    %v259 = vld [vmem:[#allocation4 + $0x1f4] sm:$0xf]
    %v260 = vld [vmem:[#allocation4 + $0x1f8] sm:$0xf]
    %v261 = vld [vmem:[#allocation4 + $0x1fc] sm:$0xf]
    %v262 = vld [vmem:[%s2] sm:$0x1]
    %v264 = vlaneseq
    %v265 = vshrl.u32 %v264, 7
    %v266 = vsub.s32 0, %v265
    %v267 = vrot.slane %v262, %v266
    %v397 = vunpack.c.l.b16 %v134
    %v398 = vunpack.c.l.b16 %v135
    %v399 = vunpack.c.l.b16 %v136
    %v400 = vunpack.c.l.b16 %v137
    %v401 = vunpack.c.l.b16 %v138
    %v402 = vunpack.c.l.b16 %v139
    %v403 = vunpack.c.l.b16 %v140
    %v404 = vunpack.c.l.b16 %v141
    %v405 = vunpack.c.l.b16 %v142
    %v406 = vunpack.c.l.b16 %v143
    %v407 = vunpack.c.l.b16 %v144
    %v408 = vunpack.c.l.b16 %v145
    %v409 = vunpack.c.l.b16 %v146
    %v410 = vunpack.c.l.b16 %v147
    %v411 = vunpack.c.l.b16 %v148
    %v412 = vunpack.c.l.b16 %v149
    %v413 = vunpack.c.l.b16 %v150
    %v414 = vunpack.c.l.b16 %v151
    %v415 = vunpack.c.l.b16 %v152
    %v416 = vunpack.c.l.b16 %v153
    %v417 = vunpack.c.l.b16 %v154
    %v418 = vunpack.c.l.b16 %v155
    %v419 = vunpack.c.l.b16 %v156
    %v420 = vunpack.c.l.b16 %v157
    %v421 = vunpack.c.l.b16 %v158
    %v422 = vunpack.c.l.b16 %v159
    %v423 = vunpack.c.l.b16 %v160
    %v424 = vunpack.c.l.b16 %v161
    %v425 = vunpack.c.l.b16 %v162
    %v426 = vunpack.c.l.b16 %v163
    %v427 = vunpack.c.l.b16 %v164
    %v428 = vunpack.c.l.b16 %v165
    %v429 = vunpack.c.l.b16 %v166
    %v430 = vunpack.c.l.b16 %v167
    %v431 = vunpack.c.l.b16 %v168
    %v432 = vunpack.c.l.b16 %v169
    %v433 = vunpack.c.l.b16 %v170
    %v434 = vunpack.c.l.b16 %v171
    %v435 = vunpack.c.l.b16 %v172
    %v436 = vunpack.c.l.b16 %v173
    %v437 = vunpack.c.l.b16 %v174
    %v438 = vunpack.c.l.b16 %v175
    %v439 = vunpack.c.l.b16 %v176
    %v440 = vunpack.c.l.b16 %v177
    %v441 = vunpack.c.l.b16 %v178
    %v442 = vunpack.c.l.b16 %v179
    %v443 = vunpack.c.l.b16 %v180
    %v444 = vunpack.c.l.b16 %v181
    %v445 = vunpack.c.l.b16 %v182
    %v446 = vunpack.c.l.b16 %v183
    %v447 = vunpack.c.l.b16 %v184
    %v448 = vunpack.c.l.b16 %v185
    %v449 = vunpack.c.l.b16 %v186
    %v450 = vunpack.c.l.b16 %v187
    %v451 = vunpack.c.l.b16 %v188
    %v452 = vunpack.c.l.b16 %v189
    %v453 = vunpack.c.l.b16 %v190
    %v454 = vunpack.c.l.b16 %v191
    %v455 = vunpack.c.l.b16 %v192
    %v456 = vunpack.c.l.b16 %v193
    %v457 = vunpack.c.l.b16 %v194
    %v458 = vunpack.c.l.b16 %v195
    %v459 = vunpack.c.l.b16 %v196
    %v460 = vunpack.c.l.b16 %v197
    %v461 = vunpack.c.l.b16 %v198
    %v462 = vunpack.c.l.b16 %v199
    %v463 = vunpack.c.l.b16 %v200
    %v464 = vunpack.c.l.b16 %v201
    %v465 = vunpack.c.l.b16 %v202
    %v466 = vunpack.c.l.b16 %v203
    %v467 = vunpack.c.l.b16 %v204
    %v468 = vunpack.c.l.b16 %v205
    %v469 = vunpack.c.l.b16 %v206
    %v470 = vunpack.c.l.b16 %v207
    %v471 = vunpack.c.l.b16 %v208
    %v472 = vunpack.c.l.b16 %v209
    %v473 = vunpack.c.l.b16 %v210
    %v474 = vunpack.c.l.b16 %v211
    %v475 = vunpack.c.l.b16 %v212
    %v476 = vunpack.c.l.b16 %v213
    %v477 = vunpack.c.l.b16 %v214
    %v478 = vunpack.c.l.b16 %v215
    %v479 = vunpack.c.l.b16 %v216
    %v480 = vunpack.c.l.b16 %v217
    %v481 = vunpack.c.l.b16 %v218
    %v482 = vunpack.c.l.b16 %v219
    %v483 = vunpack.c.l.b16 %v220
    %v484 = vunpack.c.l.b16 %v221
    %v485 = vunpack.c.l.b16 %v222
    %v486 = vunpack.c.l.b16 %v223
    %v487 = vunpack.c.l.b16 %v224
    %v488 = vunpack.c.l.b16 %v225
    %v489 = vunpack.c.l.b16 %v226
    %v490 = vunpack.c.l.b16 %v227
    %v491 = vunpack.c.l.b16 %v228
    %v492 = vunpack.c.l.b16 %v229
    %v493 = vunpack.c.l.b16 %v230
    %v494 = vunpack.c.l.b16 %v231
    %v495 = vunpack.c.l.b16 %v232
    %v496 = vunpack.c.l.b16 %v233
    %v497 = vunpack.c.l.b16 %v234
    %v498 = vunpack.c.l.b16 %v235
    %v499 = vunpack.c.l.b16 %v236
    %v500 = vunpack.c.l.b16 %v237
    %v501 = vunpack.c.l.b16 %v238
    %v502 = vunpack.c.l.b16 %v239
    %v503 = vunpack.c.l.b16 %v240
    %v504 = vunpack.c.l.b16 %v241
    %v505 = vunpack.c.l.b16 %v242
    %v506 = vunpack.c.l.b16 %v243
    %v507 = vunpack.c.l.b16 %v244
    %v508 = vunpack.c.l.b16 %v245
    %v509 = vunpack.c.l.b16 %v246
    %v510 = vunpack.c.l.b16 %v247
    %v511 = vunpack.c.l.b16 %v248
    %v512 = vunpack.c.l.b16 %v249
    %v513 = vunpack.c.l.b16 %v250
    %v514 = vunpack.c.l.b16 %v251
    %v515 = vunpack.c.l.b16 %v252
    %v516 = vunpack.c.l.b16 %v253
    %v517 = vunpack.c.l.b16 %v254
    %v518 = vunpack.c.l.b16 %v255
    %v519 = vunpack.c.l.b16 %v256
    %v520 = vunpack.c.l.b16 %v257
    %v521 = vunpack.c.l.b16 %v258
    %v522 = vunpack.c.l.b16 %v259
    %v523 = vunpack.c.l.b16 %v260
    %v524 = vunpack.c.l.b16 %v261
    %v525 = vpack.c.b16 %v398, %v397
    %v526 = vpack.c.b16 %v400, %v399
    %v527 = vpack.c.b16 %v402, %v401
    %v528 = vpack.c.b16 %v404, %v403
    %v529 = vpack.c.b16 %v406, %v405
    %v530 = vpack.c.b16 %v408, %v407
    %v531 = vpack.c.b16 %v410, %v409
    %v532 = vpack.c.b16 %v412, %v411
    %v533 = vpack.c.b16 %v414, %v413
    %v534 = vpack.c.b16 %v416, %v415
    %v535 = vpack.c.b16 %v418, %v417
    %v536 = vpack.c.b16 %v420, %v419
    %v537 = vpack.c.b16 %v422, %v421
    %v538 = vpack.c.b16 %v424, %v423
    %v539 = vpack.c.b16 %v426, %v425
    %v540 = vpack.c.b16 %v428, %v427
    %v541 = vpack.c.b16 %v430, %v429
    %v542 = vpack.c.b16 %v432, %v431
    %v543 = vpack.c.b16 %v434, %v433
    %v544 = vpack.c.b16 %v436, %v435
    %v545 = vpack.c.b16 %v438, %v437
    %v546 = vpack.c.b16 %v440, %v439
    %v547 = vpack.c.b16 %v442, %v441
    %v548 = vpack.c.b16 %v444, %v443
    %v549 = vpack.c.b16 %v446, %v445
    %v550 = vpack.c.b16 %v448, %v447
    %v551 = vpack.c.b16 %v450, %v449
    %v552 = vpack.c.b16 %v452, %v451
    %v553 = vpack.c.b16 %v454, %v453
    %v554 = vpack.c.b16 %v456, %v455
    %v555 = vpack.c.b16 %v458, %v457
    %v556 = vpack.c.b16 %v460, %v459
    %v557 = vpack.c.b16 %v462, %v461
    %v558 = vpack.c.b16 %v464, %v463
    %v559 = vpack.c.b16 %v466, %v465
    %v560 = vpack.c.b16 %v468, %v467
    %v561 = vpack.c.b16 %v470, %v469
    %v562 = vpack.c.b16 %v472, %v471
    %v563 = vpack.c.b16 %v474, %v473
    %v564 = vpack.c.b16 %v476, %v475
    %v565 = vpack.c.b16 %v478, %v477
    %v566 = vpack.c.b16 %v480, %v479
    %v567 = vpack.c.b16 %v482, %v481
    %v568 = vpack.c.b16 %v484, %v483
    %v569 = vpack.c.b16 %v486, %v485
    %v570 = vpack.c.b16 %v488, %v487
    %v571 = vpack.c.b16 %v490, %v489
    %v572 = vpack.c.b16 %v492, %v491
    %v573 = vpack.c.b16 %v494, %v493
    %v574 = vpack.c.b16 %v496, %v495
    %v575 = vpack.c.b16 %v498, %v497
    %v576 = vpack.c.b16 %v500, %v499
    %v577 = vpack.c.b16 %v502, %v501
    %v578 = vpack.c.b16 %v504, %v503
    %v579 = vpack.c.b16 %v506, %v505
    %v580 = vpack.c.b16 %v508, %v507
    %v581 = vpack.c.b16 %v510, %v509
    %v582 = vpack.c.b16 %v512, %v511
    %v583 = vpack.c.b16 %v514, %v513
    %v584 = vpack.c.b16 %v516, %v515
    %v585 = vpack.c.b16 %v518, %v517
    %v586 = vpack.c.b16 %v520, %v519
    %v587 = vpack.c.b16 %v522, %v521
    %v588 = vpack.c.b16 %v524, %v523
    %653 = vmatprep.subr.bf16.mxu0 0
    %654 = vmatpush1.bf16.msra.mxu0 %v525
    %655 = vmatprep.subr.bf16.mxu0 0
    %656 = vmatpush1.bf16.msra.mxu0 %v526
    %657 = vmatprep.subr.bf16.mxu0 0
    %658 = vmatpush1.bf16.msra.mxu0 %v527
    %659 = vmatprep.subr.bf16.mxu0 0
    %660 = vmatpush1.bf16.msra.mxu0 %v528
    %661 = vmatprep.subr.bf16.mxu0 0
    %662 = vmatpush1.bf16.msra.mxu0 %v529
    %663 = vmatprep.subr.bf16.mxu0 0
    %664 = vmatpush1.bf16.msra.mxu0 %v530
    %665 = vmatprep.subr.bf16.mxu0 0
    %666 = vmatpush1.bf16.msra.mxu0 %v531
    %667 = vmatprep.subr.bf16.mxu0 0
    %668 = vmatpush1.bf16.msra.mxu0 %v532
    %669 = vmatprep.subr.bf16.mxu0 0
    %670 = vmatpush1.bf16.msra.mxu0 %v533
    %671 = vmatprep.subr.bf16.mxu0 0
    %672 = vmatpush1.bf16.msra.mxu0 %v534
    %673 = vmatprep.subr.bf16.mxu0 0
    %674 = vmatpush1.bf16.msra.mxu0 %v535
    %675 = vmatprep.subr.bf16.mxu0 0
    %676 = vmatpush1.bf16.msra.mxu0 %v536
    %677 = vmatprep.subr.bf16.mxu0 0
    %678 = vmatpush1.bf16.msra.mxu0 %v537
    %679 = vmatprep.subr.bf16.mxu0 0
    %680 = vmatpush1.bf16.msra.mxu0 %v538
    %681 = vmatprep.subr.bf16.mxu0 0
    %682 = vmatpush1.bf16.msra.mxu0 %v539
    %683 = vmatprep.subr.bf16.mxu0 0
    %684 = vmatpush1.bf16.msra.mxu0 %v540
    %685 = vmatprep.mubr.bf16.mxu0 %v127
    %686 = vmatmul.mubr.bf16.gmra.mrb[0].mxu0 %v126
    %v687 = vpop.f32.mrb[0].mxu0
    %v688 = vadd.f32 %v267, %v687
    %v689 = vpop.f32.mrb[0].mxu0
    %v690 = vpop.f32.mrb[0].mxu0
    %v691 = vpop.f32.mrb[0].mxu0
    %692 = vdwg.mxu0
    %693 = vmatprep.subr.bf16.mxu0 0
    %694 = vmatpush1.bf16.msra.mxu0 %v541
    %695 = vmatprep.subr.bf16.mxu0 0
    %696 = vmatpush1.bf16.msra.mxu0 %v542
    %697 = vmatprep.subr.bf16.mxu0 0
    %698 = vmatpush1.bf16.msra.mxu0 %v543
    %699 = vmatprep.subr.bf16.mxu0 0
    %700 = vmatpush1.bf16.msra.mxu0 %v544
    %701 = vmatprep.subr.bf16.mxu0 0
    %702 = vmatpush1.bf16.msra.mxu0 %v545
    %703 = vmatprep.subr.bf16.mxu0 0
    %704 = vmatpush1.bf16.msra.mxu0 %v546
    %705 = vmatprep.subr.bf16.mxu0 0
    %706 = vmatpush1.bf16.msra.mxu0 %v547
    %707 = vmatprep.subr.bf16.mxu0 0
    %708 = vmatpush1.bf16.msra.mxu0 %v548
    %709 = vmatprep.subr.bf16.mxu0 0
    %710 = vmatpush1.bf16.msra.mxu0 %v549
    %711 = vmatprep.subr.bf16.mxu0 0
    %712 = vmatpush1.bf16.msra.mxu0 %v550
    %713 = vmatprep.subr.bf16.mxu0 0
    %714 = vmatpush1.bf16.msra.mxu0 %v551
    %715 = vmatprep.subr.bf16.mxu0 0
    %716 = vmatpush1.bf16.msra.mxu0 %v552
    %717 = vmatprep.subr.bf16.mxu0 0
    %718 = vmatpush1.bf16.msra.mxu0 %v553
    %719 = vmatprep.subr.bf16.mxu0 0
    %720 = vmatpush1.bf16.msra.mxu0 %v554
    %721 = vmatprep.subr.bf16.mxu0 0
    %722 = vmatpush1.bf16.msra.mxu0 %v555
    %723 = vmatprep.subr.bf16.mxu0 0
    %724 = vmatpush1.bf16.msra.mxu0 %v556
    %725 = vmatprep.mubr.bf16.mxu0 %v129
    %726 = vmatmul.mubr.bf16.gmra.mrb[0].mxu0 %v128
    %v727 = vpop.f32.mrb[0].mxu0
    %v728 = vadd.f32 %v688, %v727
    %v729 = vpop.f32.mrb[0].mxu0
    %v730 = vpop.f32.mrb[0].mxu0
    %v731 = vpop.f32.mrb[0].mxu0
    %732 = vdwg.mxu0
    %733 = vmatprep.subr.bf16.mxu0 0
    %734 = vmatpush1.bf16.msra.mxu0 %v557
    %735 = vmatprep.subr.bf16.mxu0 0
    %736 = vmatpush1.bf16.msra.mxu0 %v558
    %737 = vmatprep.subr.bf16.mxu0 0
    %738 = vmatpush1.bf16.msra.mxu0 %v559
    %739 = vmatprep.subr.bf16.mxu0 0
    %740 = vmatpush1.bf16.msra.mxu0 %v560
    %741 = vmatprep.subr.bf16.mxu0 0
    %742 = vmatpush1.bf16.msra.mxu0 %v561
    %743 = vmatprep.subr.bf16.mxu0 0
    %744 = vmatpush1.bf16.msra.mxu0 %v562
    %745 = vmatprep.subr.bf16.mxu0 0
    %746 = vmatpush1.bf16.msra.mxu0 %v563
    %747 = vmatprep.subr.bf16.mxu0 0
    %748 = vmatpush1.bf16.msra.mxu0 %v564
    %749 = vmatprep.subr.bf16.mxu0 0
    %750 = vmatpush1.bf16.msra.mxu0 %v565
    %751 = vmatprep.subr.bf16.mxu0 0
    %752 = vmatpush1.bf16.msra.mxu0 %v566
    %753 = vmatprep.subr.bf16.mxu0 0
    %754 = vmatpush1.bf16.msra.mxu0 %v567
    %755 = vmatprep.subr.bf16.mxu0 0
    %756 = vmatpush1.bf16.msra.mxu0 %v568
    %757 = vmatprep.subr.bf16.mxu0 0
    %758 = vmatpush1.bf16.msra.mxu0 %v569
    %759 = vmatprep.subr.bf16.mxu0 0
    %760 = vmatpush1.bf16.msra.mxu0 %v570
    %761 = vmatprep.subr.bf16.mxu0 0
    %762 = vmatpush1.bf16.msra.mxu0 %v571
    %763 = vmatprep.subr.bf16.mxu0 0
    %764 = vmatpush1.bf16.msra.mxu0 %v572
    %765 = vmatprep.mubr.bf16.mxu0 %v131
    %766 = vmatmul.mubr.bf16.gmra.mrb[0].mxu0 %v130
    %v767 = vpop.f32.mrb[0].mxu0
    %v768 = vadd.f32 %v728, %v767
    %v769 = vpop.f32.mrb[0].mxu0
    %v770 = vpop.f32.mrb[0].mxu0
    %v771 = vpop.f32.mrb[0].mxu0
    %772 = vdwg.mxu0
    %773 = vmatprep.subr.bf16.mxu0 0
    %774 = vmatpush1.bf16.msra.mxu0 %v573
    %775 = vmatprep.subr.bf16.mxu0 0
    %776 = vmatpush1.bf16.msra.mxu0 %v574
    %777 = vmatprep.subr.bf16.mxu0 0
    %778 = vmatpush1.bf16.msra.mxu0 %v575
    %779 = vmatprep.subr.bf16.mxu0 0
    %780 = vmatpush1.bf16.msra.mxu0 %v576
    %781 = vmatprep.subr.bf16.mxu0 0
    %782 = vmatpush1.bf16.msra.mxu0 %v577
    %783 = vmatprep.subr.bf16.mxu0 0
    %784 = vmatpush1.bf16.msra.mxu0 %v578
    %785 = vmatprep.subr.bf16.mxu0 0
    %786 = vmatpush1.bf16.msra.mxu0 %v579
    %787 = vmatprep.subr.bf16.mxu0 0
    %788 = vmatpush1.bf16.msra.mxu0 %v580
    %789 = vmatprep.subr.bf16.mxu0 0
    %790 = vmatpush1.bf16.msra.mxu0 %v581
    %791 = vmatprep.subr.bf16.mxu0 0
    %792 = vmatpush1.bf16.msra.mxu0 %v582
    %793 = vmatprep.subr.bf16.mxu0 0
    %794 = vmatpush1.bf16.msra.mxu0 %v583
    %795 = vmatprep.subr.bf16.mxu0 0
    %796 = vmatpush1.bf16.msra.mxu0 %v584
    %797 = vmatprep.subr.bf16.mxu0 0
    %798 = vmatpush1.bf16.msra.mxu0 %v585
    %799 = vmatprep.subr.bf16.mxu0 0
    %800 = vmatpush1.bf16.msra.mxu0 %v586
    %801 = vmatprep.subr.bf16.mxu0 0
    %802 = vmatpush1.bf16.msra.mxu0 %v587
    %803 = vmatprep.subr.bf16.mxu0 0
    %804 = vmatpush1.bf16.msra.mxu0 %v588
    %805 = vmatprep.mubr.bf16.mxu0 %v133
    %806 = vmatmul.mubr.bf16.gmra.mrb[0].mxu0 %v132
    %v807 = vpop.f32.mrb[0].mxu0
    %v808 = vadd.f32 %v768, %v807
    %v809 = vpop.f32.mrb[0].mxu0
    %v810 = vpop.f32.mrb[0].mxu0
    %v811 = vpop.f32.mrb[0].mxu0
    %812 = vdwg.mxu0
    %v813 = vmax.f32 %v808, 0.0
    %v814 = vpack.c.bf16 %v813, %v813
    %v815 = vld [vmem:[#allocation6] sm:$0xf]
    %v816 = vld [vmem:[#allocation6 + $0x4] sm:$0xf]
    %v817 = vld [vmem:[#allocation6 + $0x8] sm:$0xf]
    %v818 = vld [vmem:[#allocation6 + $0xc] sm:$0xf]
    %v819 = vld [vmem:[#allocation6 + $0x10] sm:$0xf]
    %v820 = vld [vmem:[#allocation6 + $0x14] sm:$0xf]
    %v821 = vld [vmem:[#allocation6 + $0x18] sm:$0xf]
    %v822 = vld [vmem:[#allocation6 + $0x1c] sm:$0xf]
    %v823 = vld [vmem:[#allocation6 + $0x20] sm:$0xf]
    %v824 = vld [vmem:[#allocation6 + $0x24] sm:$0xf]
    %v825 = vld [vmem:[#allocation6 + $0x28] sm:$0xf]
    %v826 = vld [vmem:[#allocation6 + $0x2c] sm:$0xf]
    %v827 = vld [vmem:[#allocation6 + $0x30] sm:$0xf]
    %v828 = vld [vmem:[#allocation6 + $0x34] sm:$0xf]
    %v829 = vld [vmem:[#allocation6 + $0x38] sm:$0xf]
    %v830 = vld [vmem:[#allocation6 + $0x3c] sm:$0xf]
    %v831 = vld [vmem:[%s4] sm:$0x1]
    %v833 = vlaneseq
    %v834 = vshrl.u32 %v833, 7
    %v835 = vsub.s32 0, %v834
    %v836 = vrot.slane %v831, %v835
    %v854 = vunpack.c.l.b16 %v815
    %v855 = vunpack.c.l.b16 %v816
    %v856 = vunpack.c.l.b16 %v817
    %v857 = vunpack.c.l.b16 %v818
    %v858 = vunpack.c.l.b16 %v819
    %v859 = vunpack.c.l.b16 %v820
    %v860 = vunpack.c.l.b16 %v821
    %v861 = vunpack.c.l.b16 %v822
    %v862 = vunpack.c.l.b16 %v823
    %v863 = vunpack.c.l.b16 %v824
    %v864 = vunpack.c.l.b16 %v825
    %v865 = vunpack.c.l.b16 %v826
    %v866 = vunpack.c.l.b16 %v827
    %v867 = vunpack.c.l.b16 %v828
    %v868 = vunpack.c.l.b16 %v829
    %v869 = vunpack.c.l.b16 %v830
    %v870 = vpack.c.b16 %v855, %v854
    %v871 = vpack.c.b16 %v857, %v856
    %v872 = vpack.c.b16 %v859, %v858
    %v873 = vpack.c.b16 %v861, %v860
    %v874 = vpack.c.b16 %v863, %v862
    %v875 = vpack.c.b16 %v865, %v864
    %v876 = vpack.c.b16 %v867, %v866
    %v877 = vpack.c.b16 %v869, %v868
    %886 = vmatprep.subr.bf16.mxu0 0
    %887 = vmatpush1.bf16.msra.mxu0 %v870
    %888 = vmatprep.subr.bf16.mxu0 0
    %889 = vmatpush1.bf16.msra.mxu0 %v871
    %890 = vmatprep.subr.bf16.mxu0 0
    %891 = vmatpush1.bf16.msra.mxu0 %v872
    %892 = vmatprep.subr.bf16.mxu0 0
    %893 = vmatpush1.bf16.msra.mxu0 %v873
    %894 = vmatprep.subr.bf16.mxu0 0
    %895 = vmatpush1.bf16.msra.mxu0 %v874
    %896 = vmatprep.subr.bf16.mxu0 0
    %897 = vmatpush1.bf16.msra.mxu0 %v875
    %898 = vmatprep.subr.bf16.mxu0 0
    %899 = vmatpush1.bf16.msra.mxu0 %v876
    %900 = vmatprep.subr.bf16.mxu0 0
    %901 = vmatpush1.bf16.msra.mxu0 %v877
    %902 = vmatprep.subr.bf16.mxu0 0
    %903 = vmatpush1.bf16.msra.mxu0 0
    %904 = vmatprep.subr.bf16.mxu0 0
    %905 = vmatpush1.bf16.msra.mxu0 0
    %906 = vmatprep.subr.bf16.mxu0 0
    %907 = vmatpush1.bf16.msra.mxu0 0
    %908 = vmatprep.subr.bf16.mxu0 0
    %909 = vmatpush1.bf16.msra.mxu0 0
    %910 = vmatprep.subr.bf16.mxu0 0
    %911 = vmatpush1.bf16.msra.mxu0 0
    %912 = vmatprep.subr.bf16.mxu0 0
    %913 = vmatpush1.bf16.msra.mxu0 0
    %914 = vmatprep.subr.bf16.mxu0 0
    %915 = vmatpush1.bf16.msra.mxu0 0
    %916 = vmatprep.subr.bf16.mxu0 0
    %917 = vmatpush1.bf16.msra.mxu0 0
    %918 = vmatprep.mubr.bf16.mxu0 0
    %919 = vmatmul.mubr.bf16.gmra.mrb[0].mxu0 %v814
    %v920 = vpop.f32.mrb[0].mxu0
    %v921 = vadd.f32 %v836, %v920
    %v922 = vpop.f32.mrb[0].mxu0
    %v923 = vpop.f32.mrb[0].mxu0
    %v924 = vpop.f32.mrb[0].mxu0
    %925 = vdwg.mxu0
    %v926 = vmax.f32 %v921, 0.0
    %v927 = vpack.c.bf16 %v926, %v926
    %v928 = vld [vmem:[#allocation7] sm:$0xf]
    %v929 = vld [vmem:[#allocation7 + $0x4] sm:$0xf]
    %v930 = vld [vmem:[#allocation7 + $0x8] sm:$0xf]
    %v931 = vld [vmem:[#allocation7 + $0xc] sm:$0xf]
    %v932 = vld [vmem:[#allocation7 + $0x10] sm:$0xf]
    %v933 = vld [vmem:[#allocation7 + $0x14] sm:$0xf]
    %v934 = vld [vmem:[#allocation7 + $0x18] sm:$0xf]
    %v935 = vld [vmem:[#allocation7 + $0x1c] sm:$0xf]
    %v936 = vld [vmem:[#allocation7 + $0x20] sm:$0xf]
    %v937 = vld [vmem:[#allocation7 + $0x24] sm:$0xf]
    %v938 = vld [vmem:[#allocation7 + $0x28] sm:$0xf]
    %v939 = vld [vmem:[#allocation7 + $0x2c] sm:$0xf]
    %v940 = vld [vmem:[#allocation7 + $0x30] sm:$0xf]
    %v941 = vld [vmem:[#allocation7 + $0x34] sm:$0xf]
    %v942 = vld [vmem:[#allocation7 + $0x38] sm:$0xf]
    %v943 = vld [vmem:[#allocation7 + $0x3c] sm:$0xf]
    %v944 = vld [vmem:[%s6] sm:$0x1]
    %v946 = vlaneseq
    %v947 = vshrl.u32 %v946, 7
    %v948 = vsub.s32 0, %v947
    %v949 = vrot.slane %v944, %v948
    %v967 = vunpack.c.l.b16 %v928
    %v968 = vunpack.c.l.b16 %v929
    %v969 = vunpack.c.l.b16 %v930
    %v970 = vunpack.c.l.b16 %v931
    %v971 = vunpack.c.l.b16 %v932
    %v972 = vunpack.c.l.b16 %v933
    %v973 = vunpack.c.l.b16 %v934
    %v974 = vunpack.c.l.b16 %v935
    %v975 = vunpack.c.l.b16 %v936
    %v976 = vunpack.c.l.b16 %v937
    %v977 = vunpack.c.l.b16 %v938
    %v978 = vunpack.c.l.b16 %v939
    %v979 = vunpack.c.l.b16 %v940
    %v980 = vunpack.c.l.b16 %v941
    %v981 = vunpack.c.l.b16 %v942
    %v982 = vunpack.c.l.b16 %v943
    %v983 = vpack.c.b16 %v968, %v967
    %v984 = vpack.c.b16 %v970, %v969
    %v985 = vpack.c.b16 %v972, %v971
    %v986 = vpack.c.b16 %v974, %v973
    %v987 = vpack.c.b16 %v976, %v975
    %v988 = vpack.c.b16 %v978, %v977
    %v989 = vpack.c.b16 %v980, %v979
    %v990 = vpack.c.b16 %v982, %v981
    %999 = vmatprep.subr.bf16.mxu0 0
    %1000 = vmatpush1.bf16.msra.mxu0 %v983
    %1001 = vmatprep.subr.bf16.mxu0 0
    %1002 = vmatpush1.bf16.msra.mxu0 %v984
    %1003 = vmatprep.subr.bf16.mxu0 0
    %1004 = vmatpush1.bf16.msra.mxu0 %v985
    %1005 = vmatprep.subr.bf16.mxu0 0
    %1006 = vmatpush1.bf16.msra.mxu0 %v986
    %1007 = vmatprep.subr.bf16.mxu0 0
    %1008 = vmatpush1.bf16.msra.mxu0 %v987
    %1009 = vmatprep.subr.bf16.mxu0 0
    %1010 = vmatpush1.bf16.msra.mxu0 %v988
    %1011 = vmatprep.subr.bf16.mxu0 0
    %1012 = vmatpush1.bf16.msra.mxu0 %v989
    %1013 = vmatprep.subr.bf16.mxu0 0
    %1014 = vmatpush1.bf16.msra.mxu0 %v990
    %1015 = vmatprep.subr.bf16.mxu0 0
    %1016 = vmatpush1.bf16.msra.mxu0 0
    %1017 = vmatprep.subr.bf16.mxu0 0
    %1018 = vmatpush1.bf16.msra.mxu0 0
    %1019 = vmatprep.subr.bf16.mxu0 0
    %1020 = vmatpush1.bf16.msra.mxu0 0
    %1021 = vmatprep.subr.bf16.mxu0 0
    %1022 = vmatpush1.bf16.msra.mxu0 0
    %1023 = vmatprep.subr.bf16.mxu0 0
    %1024 = vmatpush1.bf16.msra.mxu0 0
    %1025 = vmatprep.subr.bf16.mxu0 0
    %1026 = vmatpush1.bf16.msra.mxu0 0
    %1027 = vmatprep.subr.bf16.mxu0 0
    %1028 = vmatpush1.bf16.msra.mxu0 0
    %1029 = vmatprep.subr.bf16.mxu0 0
    %1030 = vmatpush1.bf16.msra.mxu0 0
    %1031 = vmatprep.mubr.bf16.mxu0 0
    %1032 = vmatmul.mubr.bf16.gmra.mrb[0].mxu0 %v927
    %v1033 = vpop.f32.mrb[0].mxu0
    %v1034 = vadd.f32 %v949, %v1033
    %v1035 = vpop.f32.mrb[0].mxu0
    %v1036 = vpop.f32.mrb[0].mxu0
    %v1037 = vpop.f32.mrb[0].mxu0
    %1038 = vdwg.mxu0
    %vm1039 = vcmask 1024
    %1040 = vst.msk [vmem:[%s7] sm:$0x3] %vm1039, %v1034
    // Predicated region
    $region46: #{tpu_custom_call.1} parent=1 // pred_check
      _
    $region47: #{tpu_custom_call.1} parent=1 // pred_check_branch
      %1042 = sbr.rel (0) target = $region49
    $region48: #{tpu_custom_call.1} parent=1 // pred_region
      _
    $region49: #{tpu_custom_call.1} parent=1 // pred_fallthru
      _
    // Predicated region
    $region50: #{tpu_custom_call.1} parent=1 // pred_check
      _
    $region51: #{tpu_custom_call.1} parent=1 // pred_check_branch
      %1044 = sbr.rel (0) target = $region53
    $region52: #{tpu_custom_call.1} parent=1 // pred_region
      _
    $region53: #{tpu_custom_call.1} parent=1 // pred_fallthru
      _
    %1045 = vsyncpa [#allocation3], 1
    %1046 = vsyncpa [#allocation5], 1
    %1047 = vsyncpa [#allocation8], 1

</llo_original>
